<compile_context>
chip_gen: v7x
topology: tpu7x:2x2x1
jax: 0.10.0
libtpu: 0.0.40
codegen_flags: <defaults>
</compile_context>

<pallas_src>
import functools

import jax
import jax.numpy as jnp
import numpy as np
from jax.experimental import pallas as pl
from jax.experimental.pallas import tpu as pltpu


def _deconv_kernel(x_ref, w_ref, b_ref, o_ref, xp_ref, *, KH, Hi, sh, pad_h, Ho):
    # x_ref : (1, Hi, Wi*Cin)       raw input rows, (W, Cin) flattened on lanes
    # w_ref : (KH, Wi*Cin, Wo*Cout) per-tap effective weights (width folded in)
    # b_ref : (1, Wo*Cout)          bias tiled over output width
    # o_ref : (1, Ho, Wo*Cout)      lane-dense output block for one batch elem
    # xp_ref: (Hp, Wi*Cin) VMEM scratch: height-dilated + height-padded input
    xp_ref[...] = jnp.zeros_like(xp_ref)
    for i in range(Hi):                              # static unroll (Hi small)
        xp_ref[pl.ds(pad_h + i * sh, 1), :] = x_ref[0, pl.ds(i, 1), :]

    acc = jnp.zeros((Ho, w_ref.shape[2]), jnp.float32)
    for ki in range(KH):                             # static unroll (KH small)
        acc = acc + jnp.dot(xp_ref[ki:ki + Ho, :], w_ref[ki],
                            preferred_element_type=jnp.float32)

    acc = acc + b_ref[...]                           # (1, Wo*Cout) broadcast
    acc = jnp.where(acc >= 0, acc, 0.2 * acc)        # LeakyReLU(0.2)
    o_ref[0, :, :] = acc.astype(o_ref.dtype)


def deconv_block(x_nchw, w_pt, bias, kernel_size, stride):
    """Matches nn.ConvTranspose2d(in,out,k,s,padding=((k[0]-2)//2,0)) + LeakyReLU(0.2)."""
    KH, KW = kernel_size
    sh, sw = stride
    ph, pw = (KH - 2) // 2, 0

    N, Cin, Hi, Wi = x_nchw.shape
    Cout = w_pt.shape[1]
    Ho = (Hi - 1) * sh - 2 * ph + KH
    Wo = (Wi - 1) * sw - 2 * pw + KW
    pad_h, pad_w = KH - 1 - ph, KW - 1 - pw
    Hp = Ho + KH - 1
    WiC, WoC = Wi * Cin, Wo * Cout

    # NCHW -> (N, Hi, Wi*Cin): channels fastest within a row (lane-contiguous).
    x_rows = jnp.transpose(x_nchw, (0, 2, 3, 1)).reshape(N, Hi, WiC)

    # ConvTranspose2d weight (Cin, Cout, KH, KW) -> flipped (KH, KW, Cin, Cout),
    # then fold all width handling into KH matrices (Wi*Cin, Wo*Cout):
    #   w_eff[ki, j*Cin+c, ow*Cout+co] = wf[ki, pad_w + j*sw - ow, c, co]
    # whenever that kj index is in [0, KW), else 0.
    wf = jnp.transpose(w_pt[:, :, ::-1, ::-1], (2, 3, 0, 1))       # (KH,KW,Cin,Cout)
    j_ix = jnp.arange(Wi)[:, None, None]
    ow_ix = jnp.arange(Wo)[None, :, None]
    kj_ix = jnp.arange(KW)[None, None, :]
    sel = (kj_ix == pad_w + j_ix * sw - ow_ix).astype(wf.dtype)    # (Wi, Wo, KW)
    w_eff = jnp.einsum('jwk,hkcd->hjcwd', sel, wf).reshape(KH, WiC, WoC)

    b_row = jnp.tile(bias.reshape(1, Cout), (1, Wo)).reshape(1, WoC)

    kernel = functools.partial(_deconv_kernel, KH=KH, Hi=Hi, sh=sh,
                               pad_h=pad_h, Ho=Ho)
    out = pl.pallas_call(
        kernel,
        out_shape=jax.ShapeDtypeStruct((N, Ho, WoC), x_nchw.dtype),
        grid=(N,),
        in_specs=[
            pl.BlockSpec((1, Hi, WiC), lambda n: (n, 0, 0)),
            pl.BlockSpec((KH, WiC, WoC), lambda n: (0, 0, 0)),
            pl.BlockSpec((1, WoC), lambda n: (0, 0)),
        ],
        out_specs=pl.BlockSpec((1, Ho, WoC), lambda n: (n, 0, 0)),
        scratch_shapes=[pltpu.VMEM((Hp, WiC), x_nchw.dtype)],
        compiler_params=pltpu.CompilerParams(
            dimension_semantics=("parallel",)),
    )(x_rows, w_eff, b_row)

    # (N, Ho, Wo*Cout) -> NCHW
    return jnp.transpose(out.reshape(N, Ho, Wo, Cout), (0, 3, 1, 2))


def deconv_block_reference(x_nchw, w_pt, bias, kernel_size, stride):
    """Pure-XLA reference for the same PyTorch semantics."""
    KH, KW = kernel_size
    sh, sw = stride
    ph, pw = (KH - 2) // 2, 0
    x = jnp.transpose(x_nchw, (0, 2, 3, 1))
    w_k = jnp.transpose(w_pt[:, :, ::-1, ::-1], (2, 3, 0, 1))
    y = jax.lax.conv_general_dilated(
        x, w_k, window_strides=(1, 1),
        padding=((KH - 1 - ph, KH - 1 - ph), (KW - 1 - pw, KW - 1 - pw)),
        lhs_dilation=(sh, sw),
        dimension_numbers=("NHWC", "HWIO", "NHWC"))
    y = y + bias.reshape(1, 1, 1, -1)
    y = jnp.where(y >= 0, y, 0.2 * y)
    return jnp.transpose(y, (0, 3, 1, 2))


if __name__ == "__main__":
    # Module config: DeconvBlock(in=4, out=8, kernel_size=(4,3), stride=(2,1))
    in_ch, out_ch = 4, 8
    kernel_size = (4, 3)          # -> padding = ((4-2)//2, 0) = (1, 0)
    stride = (2, 1)
    N, Hi, Wi = 2, 8, 16          # NCHW input: (2, 4, 8, 16)

    key = jax.random.PRNGKey(0)
    k1, k2, k3 = jax.random.split(key, 3)
    x = jax.random.normal(k1, (N, in_ch, Hi, Wi), jnp.float32)
    fan = in_ch * kernel_size[0] * kernel_size[1]
    bound = 1.0 / np.sqrt(fan)
    w = jax.random.uniform(k2, (in_ch, out_ch, kernel_size[0], kernel_size[1]),
                           jnp.float32, minval=-bound, maxval=bound)
    b = jax.random.uniform(k3, (out_ch,), jnp.float32, minval=-bound, maxval=bound)

    out = deconv_block(x, w, b, kernel_size, stride)
    out = jax.block_until_ready(out)

    ref = deconv_block_reference(x, w, b, kernel_size, stride)
    np.testing.assert_allclose(np.asarray(out), np.asarray(ref),
                               rtol=1e-5, atol=1e-5)
    print("KERNEL_OK")
</pallas_src>

<mosaic_0001>
module attributes {stable_mosaic.version = 11 : i64} {
  func.func @_deconv_kernel(%arg0: i32, %arg1: memref<1x8x64xf32, #tpu.memory_space<vmem>>, %arg2: memref<4x64x144xf32, #tpu.memory_space<vmem>>, %arg3: memref<1x144xf32, #tpu.memory_space<vmem>>, %arg4: memref<1x16x144xf32, #tpu.memory_space<vmem>>, %arg5: memref<19x64xf32, #tpu.memory_space<vmem>>) attributes {dimension_semantics = [#tpu.dimension_semantics<parallel>], iteration_bounds = array<i64: 2>, scalar_prefetch = 0 : i64, scratch_operands = 1 : i64, tpu.core_type = #tpu.core_type<tc>, window_params = [{transform_indices = @transform_0, window_bounds = array<i64: 1, 8, 64>}, {pipeline_mode = #tpu.pipeline_mode<synchronous>, transform_indices = @transform_1, window_bounds = array<i64: 4, 64, 144>}, {pipeline_mode = #tpu.pipeline_mode<synchronous>, transform_indices = @transform_2, window_bounds = array<i64: 1, 144>}, {transform_indices = @transform_3, window_bounds = array<i64: 1, 16, 144>}]} {
    %cst = arith.constant 0.000000e+00 : f32
    %0 = vector.broadcast %cst : f32 to vector<19x64xf32>
    %c0 = arith.constant 0 : index
    %c0_0 = arith.constant 0 : index
    %1 = vector.load %arg5[%c0, %c0_0] : memref<19x64xf32, #tpu.memory_space<vmem>>, vector<19x64xf32>
    tpu.vector_store %arg5[%c0, %c0_0], %0 {strides = array<i32>} : memref<19x64xf32, #tpu.memory_space<vmem>>, vector<19x64xf32>,
    %c0_1 = arith.constant 0 : index
    %c0_2 = arith.constant 0 : index
    %c0_3 = arith.constant 0 : index
    %2 = vector.load %arg1[%c0_1, %c0_2, %c0_3] : memref<1x8x64xf32, #tpu.memory_space<vmem>>, vector<1x1x64xf32>
    %3 = vector.shape_cast %2 : vector<1x1x64xf32> to vector<1x64xf32>
    %c2 = arith.constant 2 : index
    %c0_4 = arith.constant 0 : index
    %4 = vector.load %arg5[%c2, %c0_4] : memref<19x64xf32, #tpu.memory_space<vmem>>, vector<1x64xf32>
    tpu.vector_store %arg5[%c2, %c0_4], %3 {strides = array<i32>} : memref<19x64xf32, #tpu.memory_space<vmem>>, vector<1x64xf32>,
    %c0_5 = arith.constant 0 : index
    %c1 = arith.constant 1 : index
    %c0_6 = arith.constant 0 : index
    %5 = vector.load %arg1[%c0_5, %c1, %c0_6] : memref<1x8x64xf32, #tpu.memory_space<vmem>>, vector<1x1x64xf32>
    %6 = vector.shape_cast %5 : vector<1x1x64xf32> to vector<1x64xf32>
    %c4 = arith.constant 4 : index
    %c0_7 = arith.constant 0 : index
    %7 = vector.load %arg5[%c4, %c0_7] : memref<19x64xf32, #tpu.memory_space<vmem>>, vector<1x64xf32>
    tpu.vector_store %arg5[%c4, %c0_7], %6 {strides = array<i32>} : memref<19x64xf32, #tpu.memory_space<vmem>>, vector<1x64xf32>,
    %c0_8 = arith.constant 0 : index
    %c2_9 = arith.constant 2 : index
    %c0_10 = arith.constant 0 : index
    %8 = vector.load %arg1[%c0_8, %c2_9, %c0_10] : memref<1x8x64xf32, #tpu.memory_space<vmem>>, vector<1x1x64xf32>
    %9 = vector.shape_cast %8 : vector<1x1x64xf32> to vector<1x64xf32>
    %c6 = arith.constant 6 : index
    %c0_11 = arith.constant 0 : index
    %10 = vector.load %arg5[%c6, %c0_11] : memref<19x64xf32, #tpu.memory_space<vmem>>, vector<1x64xf32>
    tpu.vector_store %arg5[%c6, %c0_11], %9 {strides = array<i32>} : memref<19x64xf32, #tpu.memory_space<vmem>>, vector<1x64xf32>,
    %c0_12 = arith.constant 0 : index
    %c3 = arith.constant 3 : index
    %c0_13 = arith.constant 0 : index
    %11 = vector.load %arg1[%c0_12, %c3, %c0_13] : memref<1x8x64xf32, #tpu.memory_space<vmem>>, vector<1x1x64xf32>
    %12 = vector.shape_cast %11 : vector<1x1x64xf32> to vector<1x64xf32>
    %c8 = arith.constant 8 : index
    %c0_14 = arith.constant 0 : index
    %13 = vector.load %arg5[%c8, %c0_14] : memref<19x64xf32, #tpu.memory_space<vmem>>, vector<1x64xf32>
    tpu.vector_store %arg5[%c8, %c0_14], %12 {strides = array<i32>} : memref<19x64xf32, #tpu.memory_space<vmem>>, vector<1x64xf32>,
    %c0_15 = arith.constant 0 : index
    %c4_16 = arith.constant 4 : index
    %c0_17 = arith.constant 0 : index
    %14 = vector.load %arg1[%c0_15, %c4_16, %c0_17] : memref<1x8x64xf32, #tpu.memory_space<vmem>>, vector<1x1x64xf32>
    %15 = vector.shape_cast %14 : vector<1x1x64xf32> to vector<1x64xf32>
    %c10 = arith.constant 10 : index
    %c0_18 = arith.constant 0 : index
    %16 = vector.load %arg5[%c10, %c0_18] : memref<19x64xf32, #tpu.memory_space<vmem>>, vector<1x64xf32>
    tpu.vector_store %arg5[%c10, %c0_18], %15 {strides = array<i32>} : memref<19x64xf32, #tpu.memory_space<vmem>>, vector<1x64xf32>,
    %c0_19 = arith.constant 0 : index
    %c5 = arith.constant 5 : index
    %c0_20 = arith.constant 0 : index
    %17 = vector.load %arg1[%c0_19, %c5, %c0_20] : memref<1x8x64xf32, #tpu.memory_space<vmem>>, vector<1x1x64xf32>
    %18 = vector.shape_cast %17 : vector<1x1x64xf32> to vector<1x64xf32>
    %c12 = arith.constant 12 : index
    %c0_21 = arith.constant 0 : index
    %19 = vector.load %arg5[%c12, %c0_21] : memref<19x64xf32, #tpu.memory_space<vmem>>, vector<1x64xf32>
    tpu.vector_store %arg5[%c12, %c0_21], %18 {strides = array<i32>} : memref<19x64xf32, #tpu.memory_space<vmem>>, vector<1x64xf32>,
    %c0_22 = arith.constant 0 : index
    %c6_23 = arith.constant 6 : index
    %c0_24 = arith.constant 0 : index
    %20 = vector.load %arg1[%c0_22, %c6_23, %c0_24] : memref<1x8x64xf32, #tpu.memory_space<vmem>>, vector<1x1x64xf32>
    %21 = vector.shape_cast %20 : vector<1x1x64xf32> to vector<1x64xf32>
    %c14 = arith.constant 14 : index
    %c0_25 = arith.constant 0 : index
    %22 = vector.load %arg5[%c14, %c0_25] : memref<19x64xf32, #tpu.memory_space<vmem>>, vector<1x64xf32>
    tpu.vector_store %arg5[%c14, %c0_25], %21 {strides = array<i32>} : memref<19x64xf32, #tpu.memory_space<vmem>>, vector<1x64xf32>,
    %c0_26 = arith.constant 0 : index
    %c7 = arith.constant 7 : index
    %c0_27 = arith.constant 0 : index
    %23 = vector.load %arg1[%c0_26, %c7, %c0_27] : memref<1x8x64xf32, #tpu.memory_space<vmem>>, vector<1x1x64xf32>
    %24 = vector.shape_cast %23 : vector<1x1x64xf32> to vector<1x64xf32>
    %c16 = arith.constant 16 : index
    %c0_28 = arith.constant 0 : index
    %25 = vector.load %arg5[%c16, %c0_28] : memref<19x64xf32, #tpu.memory_space<vmem>>, vector<1x64xf32>
    tpu.vector_store %arg5[%c16, %c0_28], %24 {strides = array<i32>} : memref<19x64xf32, #tpu.memory_space<vmem>>, vector<1x64xf32>,
    %cst_29 = arith.constant 0.000000e+00 : f32
    %26 = vector.broadcast %cst_29 : f32 to vector<16x144xf32>
    %c0_30 = arith.constant 0 : index
    %c0_31 = arith.constant 0 : index
    %27 = vector.load %arg5[%c0_30, %c0_31] : memref<19x64xf32, #tpu.memory_space<vmem>>, vector<16x64xf32>
    %c0_32 = arith.constant 0 : index
    %c0_33 = arith.constant 0 : index
    %c0_34 = arith.constant 0 : index
    %28 = vector.load %arg2[%c0_32, %c0_33, %c0_34] : memref<4x64x144xf32, #tpu.memory_space<vmem>>, vector<1x64x144xf32>
    %29 = vector.shape_cast %28 : vector<1x64x144xf32> to vector<64x144xf32>
    %cst_35 = arith.constant dense<0.000000e+00> : vector<16x144xf32>
    %30 = tpu.matmul %27, %29, %cst_35 {dimension_numbers = #tpu.dot_dimension_numbers<[1], [0], [0], [1], [0, 0, 1, 1], [], []>} : vector<16x64xf32>, vector<64x144xf32>, vector<16x144xf32> -> vector<16x144xf32>
    %31 = arith.addf %26, %30 : vector<16x144xf32>
    %c1_36 = arith.constant 1 : index
    %c0_37 = arith.constant 0 : index
    %32 = vector.load %arg5[%c1_36, %c0_37] : memref<19x64xf32, #tpu.memory_space<vmem>>, vector<16x64xf32>
    %c1_38 = arith.constant 1 : index
    %c0_39 = arith.constant 0 : index
    %c0_40 = arith.constant 0 : index
    %33 = vector.load %arg2[%c1_38, %c0_39, %c0_40] : memref<4x64x144xf32, #tpu.memory_space<vmem>>, vector<1x64x144xf32>
    %34 = vector.shape_cast %33 : vector<1x64x144xf32> to vector<64x144xf32>
    %cst_41 = arith.constant dense<0.000000e+00> : vector<16x144xf32>
    %35 = tpu.matmul %32, %34, %cst_41 {dimension_numbers = #tpu.dot_dimension_numbers<[1], [0], [0], [1], [0, 0, 1, 1], [], []>} : vector<16x64xf32>, vector<64x144xf32>, vector<16x144xf32> -> vector<16x144xf32>
    %36 = arith.addf %31, %35 : vector<16x144xf32>
    %c2_42 = arith.constant 2 : index
    %c0_43 = arith.constant 0 : index
    %37 = vector.load %arg5[%c2_42, %c0_43] : memref<19x64xf32, #tpu.memory_space<vmem>>, vector<16x64xf32>
    %c2_44 = arith.constant 2 : index
    %c0_45 = arith.constant 0 : index
    %c0_46 = arith.constant 0 : index
    %38 = vector.load %arg2[%c2_44, %c0_45, %c0_46] : memref<4x64x144xf32, #tpu.memory_space<vmem>>, vector<1x64x144xf32>
    %39 = vector.shape_cast %38 : vector<1x64x144xf32> to vector<64x144xf32>
    %cst_47 = arith.constant dense<0.000000e+00> : vector<16x144xf32>
    %40 = tpu.matmul %37, %39, %cst_47 {dimension_numbers = #tpu.dot_dimension_numbers<[1], [0], [0], [1], [0, 0, 1, 1], [], []>} : vector<16x64xf32>, vector<64x144xf32>, vector<16x144xf32> -> vector<16x144xf32>
    %41 = arith.addf %36, %40 : vector<16x144xf32>
    %c3_48 = arith.constant 3 : index
    %c0_49 = arith.constant 0 : index
    %42 = vector.load %arg5[%c3_48, %c0_49] : memref<19x64xf32, #tpu.memory_space<vmem>>, vector<16x64xf32>
    %c3_50 = arith.constant 3 : index
    %c0_51 = arith.constant 0 : index
    %c0_52 = arith.constant 0 : index
    %43 = vector.load %arg2[%c3_50, %c0_51, %c0_52] : memref<4x64x144xf32, #tpu.memory_space<vmem>>, vector<1x64x144xf32>
    %44 = vector.shape_cast %43 : vector<1x64x144xf32> to vector<64x144xf32>
    %cst_53 = arith.constant dense<0.000000e+00> : vector<16x144xf32>
    %45 = tpu.matmul %42, %44, %cst_53 {dimension_numbers = #tpu.dot_dimension_numbers<[1], [0], [0], [1], [0, 0, 1, 1], [], []>} : vector<16x64xf32>, vector<64x144xf32>, vector<16x144xf32> -> vector<16x144xf32>
    %46 = arith.addf %41, %45 : vector<16x144xf32>
    %c0_54 = arith.constant 0 : index
    %c0_55 = arith.constant 0 : index
    %47 = vector.load %arg3[%c0_54, %c0_55] : memref<1x144xf32, #tpu.memory_space<vmem>>, vector<1x144xf32>
    %48 = vector.broadcast %47 : vector<1x144xf32> to vector<16x144xf32>
    %49 = arith.addf %46, %48 : vector<16x144xf32>
    %cst_56 = arith.constant 0.000000e+00 : f32
    %50 = vector.broadcast %cst_56 : f32 to vector<16x144xf32>
    %51 = arith.cmpf oge, %49, %50 : vector<16x144xf32>
    %cst_57 = arith.constant 2.000000e-01 : f32
    %52 = vector.broadcast %cst_57 : f32 to vector<16x144xf32>
    %53 = arith.mulf %52, %49 : vector<16x144xf32>
    %54 = arith.select %51, %49, %53 : vector<16x144xi1>, vector<16x144xf32>
    %c0_58 = arith.constant 0 : index
    %c0_59 = arith.constant 0 : index
    %c0_60 = arith.constant 0 : index
    %55 = vector.load %arg4[%c0_58, %c0_59, %c0_60] : memref<1x16x144xf32, #tpu.memory_space<vmem>>, vector<1x16x144xf32>
    %56 = vector.shape_cast %55 : vector<1x16x144xf32> to vector<16x144xf32>
    %57 = vector.shape_cast %54 : vector<16x144xf32> to vector<1x16x144xf32>
    tpu.vector_store %arg4[%c0_58, %c0_59, %c0_60], %57 {strides = array<i32>} : memref<1x16x144xf32, #tpu.memory_space<vmem>>, vector<1x16x144xf32>,
    return
  }
  func.func @transform_0(%arg0: i32) -> (i32, i32, i32) {
    %c0_i32 = arith.constant 0 : i32
    %c0_i32_0 = arith.constant 0 : i32
    %c0_i32_1 = arith.constant 0 : i32
    return %arg0, %c0_i32, %c0_i32_0 : i32, i32, i32
  }
  func.func @transform_1(%arg0: i32) -> (i32, i32, i32) {
    %c0_i32 = arith.constant 0 : i32
    %c0_i32_0 = arith.constant 0 : i32
    %c0_i32_1 = arith.constant 0 : i32
    %c0_i32_2 = arith.constant 0 : i32
    return %c0_i32, %c0_i32_0, %c0_i32_1 : i32, i32, i32
  }
  func.func @transform_2(%arg0: i32) -> (i32, i32) {
    %c0_i32 = arith.constant 0 : i32
    %c0_i32_0 = arith.constant 0 : i32
    %c0_i32_1 = arith.constant 0 : i32
    return %c0_i32, %c0_i32_0 : i32, i32
  }
  func.func @transform_3(%arg0: i32) -> (i32, i32, i32) {
    %c0_i32 = arith.constant 0 : i32
    %c0_i32_0 = arith.constant 0 : i32
    %c0_i32_1 = arith.constant 0 : i32
    return %arg0, %c0_i32, %c0_i32_0 : i32, i32, i32
  }
}

</mosaic_0001>

<llo_original>
// kernel: tpu_custom_call.1
$region0: #{tpu_custom_call.1}
  #allocation0 [shape = 'u32[]', space=smem, size = 0x4, offset = 0x4, fixed_abs, tag = 'smem constant byte address 0x4 - core index']
  #allocation1 [shape = 'u32[144,128]{1,0:T(1,128)}', space=vmem, size = 0x12000, scoped, tag = 'internal scratch']
  #allocation2 [shape = 'f32[19,64]{1,0:T(8,128)}', space=vmem, size = 0x3000, scoped, tag = 'scratch operand']
  %s0 = inlined_call_operand.hbm [shape: f32[2,8,64], index: 0, kind: input, shape index: {}]
  %s1 = inlined_call_operand.hbm [shape: f32[4,64,144], index: 1, kind: input, shape index: {}]
  %s2 = inlined_call_operand.vmem [shape: f32[1,144], index: 2, kind: input, shape index: {}]
  %s3 = inlined_call_operand.hbm [shape: f32[2,16,144], index: 3, kind: output, shape index: {}]
  %s4 = sld [smem:[#allocation0]]
  $region53: #{tpu_custom_call.1} parent=0
    _
  %s6 = ssub.s32 1, %s4
  %s7 = scalar_select 0, %s6, %s4
  $region1: #{tpu_custom_call.1} parent=0
    #allocation3 [shape = 'u8[8192]{0}', space=vmem, size = 0x2000, scoped, tag = 'input window, operand 0']
    #allocation4 [shape = 's32[2]{0}', space=sflag, size = 0x8, scoped, tag = 'scoped memory for tpu_custom_call.1']
    #allocation5 [shape = 's32[2]{0}', space=sflag, size = 0x8, scoped, tag = 'scoped memory for tpu_custom_call.1']
    #allocation6 [shape = 'u8[262144]{0}', space=vmem, size = 0x40000, scoped, tag = 'input window, operand 1, single buffered']
    #allocation7 [shape = 's32[1]{0}', space=sflag, size = 0x4, scoped, tag = 'scoped memory for tpu_custom_call.1']
    #allocation8 [shape = 'u8[32768]{0}', space=vmem, size = 0x8000, scoped, tag = 'output window, operand 0']
    %8 = vsyncpa [#allocation4], 0
    %s9 = scalar_lea.sflag [#allocation4], 1
    %10 = vsyncpa %s9, 0
    %11 = vsyncpa [#allocation7], 0
    %12 = vsyncpa [#allocation5], 0
    %s13 = scalar_lea.sflag [#allocation5], 1
    %14 = vsyncpa %s13, 0
    loop: start=0, step=1, limit=4
    $region2: #{tpu_custom_call.1} parent=1 // loop_pre_header
      _
    $region3: #{tpu_custom_call.1} parent=1 // loop_header
      %s16 = sphi 0, %s20
      %p17 = scmp.ge.s32.totalorder %s16, 4
      %s26 = sphi 0, %s28
      %s29 = sphi 0, %s26
      %s30 = sphi 0, %s29
      %s46 = sphi 0, %s30
      %s50 = sphi 0, %s50
      %s52 = sphi 0, %s50
      %s53 = sphi 0, %s52
      %s67 = sphi 0, %s53
      %s71 = sphi 0, %s71
      %s73 = sphi 0, %s71
      %s74 = sphi 0, %s73
      %s88 = sphi 0, %s74
      %s94 = sphi 0, %s96
      %s97 = sphi 0, %s94
      %s98 = sphi 0, %s97
      %s114 = sphi 0, %s98
    $region4: #{tpu_custom_call.1} parent=1 // loop_header_branch
      %19 = sbr.rel (%p17) target = $region8
    $region5: #{tpu_custom_call.1} parent=1 // loop_body
      %s21 = ssub.s32 %s16, 1
      %s22 = ssub.s32 %s16, 2
      %s23 = sadd.s32 %s16, 1
      %s24 = ssub.s32 %s16, %s23
      %p25 = scmp.eq.s32.totalorder %s24, 0
      %s27 = sadd.s32 %s26, 1
      %s28 = scalar_select %p25, %s26, %s27
      %p31 = pneg %p25
      %p32 = scmp.eq.s32.totalorder %s16, 1
      %p33 = por %p31, %p32
      %p34 = scmp.ne.s32.totalorder %s26, %s29
      %p35 = scmp.eq.s32.totalorder %s16, 0
      %p36 = por %p34, %p35
      %p37 = scmp.ne.s32.totalorder %s26, %s29
      %p38 = scmp.eq.s32.totalorder %s21, 1
      %p39 = por %p37, %p38
      %p40 = scmp.ne.s32.totalorder %s29, %s30
      %p41 = scmp.eq.s32.totalorder %s21, 0
      %p42 = por %p40, %p41
      %p43 = scmp.ne.s32.totalorder %s29, %s30
      %p44 = scmp.eq.s32.totalorder %s22, 1
      %p45 = por %p43, %p44
      %p47 = scmp.ne.s32.totalorder %s30, %s46
      %p48 = scmp.eq.s32.totalorder %s22, 0
      %p49 = por %p47, %p48
      %s51 = sadd.s32 %s50, 1
      %p54 = scmp.eq.s32.totalorder %s16, 1
      %p55 = scmp.ne.s32.totalorder %s50, %s52
      %p56 = scmp.eq.s32.totalorder %s16, 0
      %p57 = por %p55, %p56
      %p58 = scmp.ne.s32.totalorder %s50, %s52
      %p59 = scmp.eq.s32.totalorder %s21, 1
      %p60 = por %p58, %p59
      %p61 = scmp.ne.s32.totalorder %s52, %s53
      %p62 = scmp.eq.s32.totalorder %s21, 0
      %p63 = por %p61, %p62
      %p64 = scmp.ne.s32.totalorder %s52, %s53
      %p65 = scmp.eq.s32.totalorder %s22, 1
      %p66 = por %p64, %p65
      %p68 = scmp.ne.s32.totalorder %s53, %s67
      %p69 = scmp.eq.s32.totalorder %s22, 0
      %p70 = por %p68, %p69
      %s72 = sadd.s32 %s71, 1
      %p75 = scmp.eq.s32.totalorder %s16, 1
      %p76 = scmp.ne.s32.totalorder %s71, %s73
      %p77 = scmp.eq.s32.totalorder %s16, 0
      %p78 = por %p76, %p77
      %p79 = scmp.ne.s32.totalorder %s71, %s73
      %p80 = scmp.eq.s32.totalorder %s21, 1
      %p81 = por %p79, %p80
      %p82 = scmp.ne.s32.totalorder %s73, %s74
      %p83 = scmp.eq.s32.totalorder %s21, 0
      %p84 = por %p82, %p83
      %p85 = scmp.ne.s32.totalorder %s73, %s74
      %p86 = scmp.eq.s32.totalorder %s22, 1
      %p87 = por %p85, %p86
      %p89 = scmp.ne.s32.totalorder %s74, %s88
      %p90 = scmp.eq.s32.totalorder %s22, 0
      %p91 = por %p89, %p90
      %s92 = ssub.s32 %s16, %s23
      %p93 = scmp.eq.s32.totalorder %s92, 0
      %s95 = sadd.s32 %s94, 1
      %s96 = scalar_select %p93, %s94, %s95
      %p99 = pneg %p93
      %p100 = scmp.eq.s32.totalorder %s16, 1
      %p101 = por %p99, %p100
      %p102 = scmp.ne.s32.totalorder %s94, %s97
      %p103 = scmp.eq.s32.totalorder %s16, 0
      %p104 = por %p102, %p103
      %p105 = scmp.ne.s32.totalorder %s94, %s97
      %p106 = scmp.eq.s32.totalorder %s21, 1
      %p107 = por %p105, %p106
      %p108 = scmp.ne.s32.totalorder %s97, %s98
      %p109 = scmp.eq.s32.totalorder %s21, 0
      %p110 = por %p108, %p109
      %p111 = scmp.ne.s32.totalorder %s97, %s98
      %p112 = scmp.eq.s32.totalorder %s22, 1
      %p113 = por %p111, %p112
      %p115 = scmp.ne.s32.totalorder %s98, %s114
      %p116 = scmp.eq.s32.totalorder %s22, 0
      %p117 = por %p115, %p116
      %p118 = scmp.le.s32.totalorder 1, %s16
      %p119 = scmp.lt.s32.totalorder %s16, 3
      %p120 = pnand %p118, %p119
      %p121 = pneg %p120
      // Predicated region
      $region9: #{tpu_custom_call.1} parent=5 // pred_check
        _
      $region10: #{tpu_custom_call.1} parent=5 // pred_check_branch
        %123 = sbr.rel (%p120) target = $region12
      $region11: #{tpu_custom_call.1} parent=5 // pred_region
        %s124 = ssub.s32 %s16, 1
        // Predicated region
        $region13: #{tpu_custom_call.1} parent=11 // pred_check
          %p125 = pneg %p63
        $region14: #{tpu_custom_call.1} parent=11 // pred_check_branch
          %127 = sbr.rel (%p125) target = $region16
        $region15: #{tpu_custom_call.1} parent=11 // pred_region
          %s129 = ssub.s32 8192, 8192
          %130 = vsyncadd [#allocation7], %s129
          %s131 = sshll.u32 [#allocation6], 4
          %s132 = int_to_ptr.vmem [resolvable:$true] %s131
          %137 = dma.hbm_to_vmem [thread:$0]  %s1, 8192, %s132, [#allocation7], 256, 256, 16
        $region16: #{tpu_custom_call.1} parent=11 // pred_fallthru
          _
        // Predicated region
        $region17: #{tpu_custom_call.1} parent=11 // pred_check
          %p138 = pneg %p84
        $region18: #{tpu_custom_call.1} parent=11 // pred_check_branch
          %140 = sbr.rel (%p138) target = $region20
        $region19: #{tpu_custom_call.1} parent=11 // pred_region
          _
        $region20: #{tpu_custom_call.1} parent=11 // pred_fallthru
          _
      $region12: #{tpu_custom_call.1} parent=5 // pred_fallthru
        _
      %p141 = scmp.lt.s32.totalorder %s16, 2
      // Predicated region
      $region21: #{tpu_custom_call.1} parent=5 // pred_check
        %p142 = pneg %p141
      $region22: #{tpu_custom_call.1} parent=5 // pred_check_branch
        %144 = sbr.rel (%p142) target = $region24
      $region23: #{tpu_custom_call.1} parent=5 // pred_region
        // Predicated region
        $region25: #{tpu_custom_call.1} parent=23 // pred_check
          %p145 = pneg %p36
        $region26: #{tpu_custom_call.1} parent=23 // pred_check_branch
          %147 = sbr.rel (%p145) target = $region28
        $region27: #{tpu_custom_call.1} parent=23 // pred_region
          %s148 = sand.u32 %s26, 1
          %s149 = scalar_lea.sflag [#allocation4], %s148
          %s150 = sand.u32 %s26, 1
          %s151 = smul.addr %s150, 8
          %s152 = scalar_lea.vmem [#allocation3], %s151
          %s154 = ssub.s32 128, 128
          %155 = vsyncadd %s149, %s154
          %s156 = smul.addr %s16, 128
          %s157 = scalar_lea.hbm %s0, %s156
          %s159 = sshll.u32 %s152, 4
          %s160 = int_to_ptr.vmem [resolvable:$true] %s159
          %162 = dma.hbm_to_vmem [thread:$0]  %s157, 128, %s160, %s149
        $region28: #{tpu_custom_call.1} parent=23 // pred_fallthru
          _
      $region24: #{tpu_custom_call.1} parent=5 // pred_fallthru
        _
      %p163 = scmp.le.s32.totalorder 1, %s16
      %p164 = scmp.lt.s32.totalorder %s16, 3
      %p165 = pnand %p163, %p164
      %p166 = pneg %p165
      // Predicated region
      $region29: #{tpu_custom_call.1} parent=5 // pred_check
        _
      $region30: #{tpu_custom_call.1} parent=5 // pred_check_branch
        %168 = sbr.rel (%p165) target = $region32
      $region31: #{tpu_custom_call.1} parent=5 // pred_region
        %s169 = ssub.s32 %s16, 1
        %s170 = sand.u32 %s29, 1
        %s171 = scalar_lea.sflag [#allocation4], %s170
        %s172 = sand.u32 %s29, 1
        %s173 = smul.addr %s172, 8
        %s174 = scalar_lea.vmem [#allocation3], %s173
        // Predicated region
        $region33: #{tpu_custom_call.1} parent=31 // pred_check
          %p175 = pneg %p42
        $region34: #{tpu_custom_call.1} parent=31 // pred_check_branch
          %177 = sbr.rel (%p175) target = $region36
        $region35: #{tpu_custom_call.1} parent=31 // pred_region
          %178 = dma.done %s171, 128
        $region36: #{tpu_custom_call.1} parent=31 // pred_fallthru
          _
        // Predicated region
        $region37: #{tpu_custom_call.1} parent=31 // pred_check
          %p179 = pneg %p63
        $region38: #{tpu_custom_call.1} parent=31 // pred_check_branch
          %181 = sbr.rel (%p179) target = $region40
        $region39: #{tpu_custom_call.1} parent=31 // pred_region
          %182 = dma.done [#allocation7], 8192
        $region40: #{tpu_custom_call.1} parent=31 // pred_fallthru
          _
        %s183 = sand.u32 %s29, 1
        %s184 = scalar_lea.sflag [#allocation4], %s183
        %s185 = sand.u32 %s29, 1
        %s186 = smul.addr %s185, 8
        %s187 = scalar_lea.vmem [#allocation3], %s186
        %p188 = pneg %p42
        %p189 = pneg %p39
        %p190 = pneg %p63
        %p191 = pneg %p60
        %p192 = pneg %p84
        %p193 = pneg %p81
        %p194 = pneg %p110
        %p195 = pneg %p107
        %s196 = sand.u32 %s97, 1
        %s197 = scalar_lea.sflag [#allocation5], %s196
        %s198 = sand.u32 %s97, 1
        %s199 = smul.addr %s198, 32
        %s200 = scalar_lea.vmem [#allocation8], %s199
        %vm201 = vcmask 523264
        %202 = vst.msk [vmem:[#allocation2] sm:$0xff] %vm201, 0.0
        %203 = vst.msk [vmem:[#allocation2 + $0x8] sm:$0xff] %vm201, 0.0
        %vm204 = vcmask 518144
        %205 = vst.msk [vmem:[#allocation2 + $0x10] sm:$0x7] %vm204, 0.0
        %v206 = vld [vmem:[%s174] sm:$0x1]
        %vm207 = vcmask 516096
        %208 = vst.msk [vmem:[#allocation2 + $0x2] sm:$0x1] %vm207, %v206
        %v209 = vld [vmem:[%s174 + $0x1] sm:$0x1]
        %210 = vst.msk [vmem:[#allocation2 + $0x4] sm:$0x1] %vm207, %v209
        %v211 = vld [vmem:[%s174 + $0x2] sm:$0x1]
        %212 = vst.msk [vmem:[#allocation2 + $0x6] sm:$0x1] %vm207, %v211
        %v213 = vld [vmem:[%s174 + $0x3] sm:$0x1]
        %214 = vst.msk [vmem:[#allocation2 + $0x8] sm:$0x1] %vm207, %v213
        %v215 = vld [vmem:[%s174 + $0x4] sm:$0x1]
        %216 = vst.msk [vmem:[#allocation2 + $0xa] sm:$0x1] %vm207, %v215
        %v217 = vld [vmem:[%s174 + $0x5] sm:$0x1]
        %218 = vst.msk [vmem:[#allocation2 + $0xc] sm:$0x1] %vm207, %v217
        %v219 = vld [vmem:[%s174 + $0x6] sm:$0x1]
        %220 = vst.msk [vmem:[#allocation2 + $0xe] sm:$0x1] %vm207, %v219
        %v221 = vld [vmem:[%s174 + $0x7] sm:$0x1]
        %222 = vst.msk [vmem:[#allocation2 + $0x10] sm:$0x1] %vm207, %v221
        %v223 = vld [vmem:[#allocation2] sm:$0xff]
        %v224 = vld [vmem:[#allocation2 + $0x8] sm:$0xff]
        %v225 = vld [vmem:[#allocation6] sm:$0xff]
        %v226 = vld [vmem:[#allocation6 + $0x8] sm:$0xff]
        %v227 = vld [vmem:[#allocation6 + $0x10] sm:$0xff]
        %v228 = vld [vmem:[#allocation6 + $0x18] sm:$0xff]
        %v229 = vld [vmem:[#allocation6 + $0x20] sm:$0xff]
        %v230 = vld [vmem:[#allocation6 + $0x28] sm:$0xff]
        %v231 = vld [vmem:[#allocation6 + $0x30] sm:$0xff]
        %v232 = vld [vmem:[#allocation6 + $0x38] sm:$0xff]
        %v233 = vld [vmem:[#allocation6 + $0x40] sm:$0xff]
        %v234 = vld [vmem:[#allocation6 + $0x48] sm:$0xff]
        %v235 = vld [vmem:[#allocation6 + $0x50] sm:$0xff]
        %v236 = vld [vmem:[#allocation6 + $0x58] sm:$0xff]
        %v237 = vld [vmem:[#allocation6 + $0x60] sm:$0xff]
        %v238 = vld [vmem:[#allocation6 + $0x68] sm:$0xff]
        %v239 = vld [vmem:[#allocation6 + $0x70] sm:$0xff]
        %v240 = vld [vmem:[#allocation6 + $0x78] sm:$0xff]
        %v241 = vld [vmem:[#allocation2 + $0x1] sm:$0xff]
        %v242 = vld [vmem:[#allocation2 + $0x9] sm:$0xff]
        %s243 = scalar_lea.vmem [#allocation6], 128
        %v244 = vld [vmem:[%s243] sm:$0xff]
        %v245 = vld [vmem:[%s243 + $0x8] sm:$0xff]
        %v246 = vld [vmem:[%s243 + $0x10] sm:$0xff]
        %v247 = vld [vmem:[%s243 + $0x18] sm:$0xff]
        %v248 = vld [vmem:[%s243 + $0x20] sm:$0xff]
        %v249 = vld [vmem:[%s243 + $0x28] sm:$0xff]
        %v250 = vld [vmem:[%s243 + $0x30] sm:$0xff]
        %v251 = vld [vmem:[%s243 + $0x38] sm:$0xff]
        %v252 = vld [vmem:[%s243 + $0x40] sm:$0xff]
        %v253 = vld [vmem:[%s243 + $0x48] sm:$0xff]
        %v254 = vld [vmem:[%s243 + $0x50] sm:$0xff]
        %v255 = vld [vmem:[%s243 + $0x58] sm:$0xff]
        %v256 = vld [vmem:[%s243 + $0x60] sm:$0xff]
        %v257 = vld [vmem:[%s243 + $0x68] sm:$0xff]
        %v258 = vld [vmem:[%s243 + $0x70] sm:$0xff]
        %v259 = vld [vmem:[%s243 + $0x78] sm:$0xff]
        %v261 = vsel %vm201, %v241, 0
        %v264 = vsel %vm201, %v242, 0
        %266 = vmatprep.subr.mxu0 %v245
        %267 = vmatpush1.msra.mxu0 %v244
        %268 = vmatprep.subr.mxu0 %v247
        %269 = vmatpush1.msra.mxu0 %v246
        %270 = vmatprep.subr.mxu0 %v249
        %271 = vmatpush1.msra.mxu0 %v248
        %272 = vmatprep.subr.mxu0 %v251
        %273 = vmatpush1.msra.mxu0 %v250
        %274 = vmatprep.subr.mxu0 %v253
        %275 = vmatpush1.msra.mxu0 %v252
        %276 = vmatprep.subr.mxu0 %v255
        %277 = vmatpush1.msra.mxu0 %v254
        %278 = vmatprep.subr.mxu0 %v257
        %279 = vmatpush1.msra.mxu0 %v256
        %280 = vmatprep.subr.mxu0 %v259
        %281 = vmatpush1.msra.mxu0 %v258
        %282 = vmatprep.subr.mxu0 0.0
        %283 = vmatpush1.msra.mxu0 0.0
        %284 = vmatprep.subr.mxu0 0.0
        %285 = vmatpush1.msra.mxu0 0.0
        %286 = vmatprep.subr.mxu0 0.0
        %287 = vmatpush1.msra.mxu0 0.0
        %288 = vmatprep.subr.mxu0 0.0
        %289 = vmatpush1.msra.mxu0 0.0
        %290 = vmatprep.subr.mxu0 0.0
        %291 = vmatpush1.msra.mxu0 0.0
        %292 = vmatprep.subr.mxu0 0.0
        %293 = vmatpush1.msra.mxu0 0.0
        %294 = vmatprep.subr.mxu0 0.0
        %295 = vmatpush1.msra.mxu0 0.0
        %296 = vmatprep.subr.mxu0 0.0
        %297 = vmatpush1.msra.mxu0 0.0
        %298 = vmatprep.subr.mxu0 0.0
        %299 = vmatpush1.msra.mxu0 0.0
        %300 = vmatprep.subr.mxu0 0.0
        %301 = vmatpush1.msra.mxu0 0.0
        %302 = vmatprep.subr.mxu0 0.0
        %303 = vmatpush1.msra.mxu0 0.0
        %304 = vmatprep.subr.mxu0 0.0
        %305 = vmatpush1.msra.mxu0 0.0
        %306 = vmatprep.subr.mxu0 0.0
        %307 = vmatpush1.msra.mxu0 0.0
        %308 = vmatprep.subr.mxu0 0.0
        %309 = vmatpush1.msra.mxu0 0.0
        %310 = vmatprep.subr.mxu0 0.0
        %311 = vmatpush1.msra.mxu0 0.0
        %312 = vmatprep.subr.mxu0 0.0
        %313 = vmatpush1.msra.mxu0 0.0
        %314 = vmatprep.subr.mxu0 0.0
        %315 = vmatpush1.msra.mxu0 0.0
        %316 = vmatprep.subr.mxu0 0.0
        %317 = vmatpush1.msra.mxu0 0.0
        %318 = vmatprep.subr.mxu0 0.0
        %319 = vmatpush1.msra.mxu0 0.0
        %320 = vmatprep.subr.mxu0 0.0
        %321 = vmatpush1.msra.mxu0 0.0
        %322 = vmatprep.subr.mxu0 0.0
        %323 = vmatpush1.msra.mxu0 0.0
        %324 = vmatprep.subr.mxu0 0.0
        %325 = vmatpush1.msra.mxu0 0.0
        %326 = vmatprep.subr.mxu0 0.0
        %327 = vmatpush1.msra.mxu0 0.0
        %328 = vmatprep.subr.mxu0 0.0
        %329 = vmatpush1.msra.mxu0 0.0
        %330 = vmatprep.mubr.f32.mxu0 0.0
        %331 = vmatmul.mubr.f32.gmra.mrb[0].mxu0 %v261
        %v332 = vpop.f32.mrb[0].mxu0
        %v333 = vadd.f32 0.0, %v332
        %v334 = vpop.f32.mrb[0].mxu0
        %v335 = vadd.f32 0.0, %v334
        %336 = vmatprep.mubr.f32.mxu0 0.0
        %337 = vmatmul.mubr.f32.gmra.mrb[0].mxu0 %v264
        %v338 = vpop.f32.mrb[0].mxu0
        %v339 = vadd.f32 0.0, %v338
        %v340 = vpop.f32.mrb[0].mxu0
        %v341 = vadd.f32 0.0, %v340
        %342 = vdwg.mxu0
        %v344 = vsel %vm201, %v223, 0
        %v347 = vsel %vm201, %v224, 0
        %349 = vmatprep.subr.mxu0 %v226
        %350 = vmatpush1.msra.mxu0 %v225
        %351 = vmatprep.subr.mxu0 %v228
        %352 = vmatpush1.msra.mxu0 %v227
        %353 = vmatprep.subr.mxu0 %v230
        %354 = vmatpush1.msra.mxu0 %v229
        %355 = vmatprep.subr.mxu0 %v232
        %356 = vmatpush1.msra.mxu0 %v231
        %357 = vmatprep.subr.mxu0 %v234
        %358 = vmatpush1.msra.mxu0 %v233
        %359 = vmatprep.subr.mxu0 %v236
        %360 = vmatpush1.msra.mxu0 %v235
        %361 = vmatprep.subr.mxu0 %v238
        %362 = vmatpush1.msra.mxu0 %v237
        %363 = vmatprep.subr.mxu0 %v240
        %364 = vmatpush1.msra.mxu0 %v239
        %365 = vmatprep.subr.mxu0 0.0
        %366 = vmatpush1.msra.mxu0 0.0
        %367 = vmatprep.subr.mxu0 0.0
        %368 = vmatpush1.msra.mxu0 0.0
        %369 = vmatprep.subr.mxu0 0.0
        %370 = vmatpush1.msra.mxu0 0.0
        %371 = vmatprep.subr.mxu0 0.0
        %372 = vmatpush1.msra.mxu0 0.0
        %373 = vmatprep.subr.mxu0 0.0
        %374 = vmatpush1.msra.mxu0 0.0
        %375 = vmatprep.subr.mxu0 0.0
        %376 = vmatpush1.msra.mxu0 0.0
        %377 = vmatprep.subr.mxu0 0.0
        %378 = vmatpush1.msra.mxu0 0.0
        %379 = vmatprep.subr.mxu0 0.0
        %380 = vmatpush1.msra.mxu0 0.0
        %381 = vmatprep.subr.mxu0 0.0
        %382 = vmatpush1.msra.mxu0 0.0
        %383 = vmatprep.subr.mxu0 0.0
        %384 = vmatpush1.msra.mxu0 0.0
        %385 = vmatprep.subr.mxu0 0.0
        %386 = vmatpush1.msra.mxu0 0.0
        %387 = vmatprep.subr.mxu0 0.0
        %388 = vmatpush1.msra.mxu0 0.0
        %389 = vmatprep.subr.mxu0 0.0
        %390 = vmatpush1.msra.mxu0 0.0
        %391 = vmatprep.subr.mxu0 0.0
        %392 = vmatpush1.msra.mxu0 0.0
        %393 = vmatprep.subr.mxu0 0.0
        %394 = vmatpush1.msra.mxu0 0.0
        %395 = vmatprep.subr.mxu0 0.0
        %396 = vmatpush1.msra.mxu0 0.0
        %397 = vmatprep.subr.mxu0 0.0
        %398 = vmatpush1.msra.mxu0 0.0
        %399 = vmatprep.subr.mxu0 0.0
        %400 = vmatpush1.msra.mxu0 0.0
        %401 = vmatprep.subr.mxu0 0.0
        %402 = vmatpush1.msra.mxu0 0.0
        %403 = vmatprep.subr.mxu0 0.0
        %404 = vmatpush1.msra.mxu0 0.0
        %405 = vmatprep.subr.mxu0 0.0
        %406 = vmatpush1.msra.mxu0 0.0
        %407 = vmatprep.subr.mxu0 0.0
        %408 = vmatpush1.msra.mxu0 0.0
        %409 = vmatprep.subr.mxu0 0.0
        %410 = vmatpush1.msra.mxu0 0.0
        %411 = vmatprep.subr.mxu0 0.0
        %412 = vmatpush1.msra.mxu0 0.0
        %413 = vmatprep.mubr.f32.mxu0 0.0
        %414 = vmatmul.mubr.f32.gmra.mrb[0].mxu0 %v344
        %v415 = vpop.f32.mrb[0].mxu0
        %v416 = vadd.f32 %v333, %v415
        %v417 = vpop.f32.mrb[0].mxu0
        %v418 = vadd.f32 %v335, %v417
        %419 = vmatprep.mubr.f32.mxu0 0.0
        %420 = vmatmul.mubr.f32.gmra.mrb[0].mxu0 %v347
        %v421 = vpop.f32.mrb[0].mxu0
        %v422 = vadd.f32 %v339, %v421
        %v423 = vpop.f32.mrb[0].mxu0
        %v424 = vadd.f32 %v341, %v423
        %425 = vdwg.mxu0
        %v426 = vld [vmem:[#allocation2 + $0x2] sm:$0xff]
        %v427 = vld [vmem:[#allocation2 + $0xa] sm:$0xff]
        %s428 = scalar_lea.vmem [#allocation6], 256
        %v429 = vld [vmem:[%s428] sm:$0xff]
        %v430 = vld [vmem:[%s428 + $0x8] sm:$0xff]
        %v431 = vld [vmem:[%s428 + $0x10] sm:$0xff]
        %v432 = vld [vmem:[%s428 + $0x18] sm:$0xff]
        %v433 = vld [vmem:[%s428 + $0x20] sm:$0xff]
        %v434 = vld [vmem:[%s428 + $0x28] sm:$0xff]
        %v435 = vld [vmem:[%s428 + $0x30] sm:$0xff]
        %v436 = vld [vmem:[%s428 + $0x38] sm:$0xff]
        %v437 = vld [vmem:[%s428 + $0x40] sm:$0xff]
        %v438 = vld [vmem:[%s428 + $0x48] sm:$0xff]
        %v439 = vld [vmem:[%s428 + $0x50] sm:$0xff]
        %v440 = vld [vmem:[%s428 + $0x58] sm:$0xff]
        %v441 = vld [vmem:[%s428 + $0x60] sm:$0xff]
        %v442 = vld [vmem:[%s428 + $0x68] sm:$0xff]
        %v443 = vld [vmem:[%s428 + $0x70] sm:$0xff]
        %v444 = vld [vmem:[%s428 + $0x78] sm:$0xff]
        %v446 = vsel %vm201, %v426, 0
        %v449 = vsel %vm201, %v427, 0
        %451 = vmatprep.subr.mxu0 %v430
        %452 = vmatpush1.msra.mxu0 %v429
        %453 = vmatprep.subr.mxu0 %v432
        %454 = vmatpush1.msra.mxu0 %v431
        %455 = vmatprep.subr.mxu0 %v434
        %456 = vmatpush1.msra.mxu0 %v433
        %457 = vmatprep.subr.mxu0 %v436
        %458 = vmatpush1.msra.mxu0 %v435
        %459 = vmatprep.subr.mxu0 %v438
        %460 = vmatpush1.msra.mxu0 %v437
        %461 = vmatprep.subr.mxu0 %v440
        %462 = vmatpush1.msra.mxu0 %v439
        %463 = vmatprep.subr.mxu0 %v442
        %464 = vmatpush1.msra.mxu0 %v441
        %465 = vmatprep.subr.mxu0 %v444
        %466 = vmatpush1.msra.mxu0 %v443
        %467 = vmatprep.subr.mxu0 0.0
        %468 = vmatpush1.msra.mxu0 0.0
        %469 = vmatprep.subr.mxu0 0.0
        %470 = vmatpush1.msra.mxu0 0.0
        %471 = vmatprep.subr.mxu0 0.0
        %472 = vmatpush1.msra.mxu0 0.0
        %473 = vmatprep.subr.mxu0 0.0
        %474 = vmatpush1.msra.mxu0 0.0
        %475 = vmatprep.subr.mxu0 0.0
        %476 = vmatpush1.msra.mxu0 0.0
        %477 = vmatprep.subr.mxu0 0.0
        %478 = vmatpush1.msra.mxu0 0.0
        %479 = vmatprep.subr.mxu0 0.0
        %480 = vmatpush1.msra.mxu0 0.0
        %481 = vmatprep.subr.mxu0 0.0
        %482 = vmatpush1.msra.mxu0 0.0
        %483 = vmatprep.subr.mxu0 0.0
        %484 = vmatpush1.msra.mxu0 0.0
        %485 = vmatprep.subr.mxu0 0.0
        %486 = vmatpush1.msra.mxu0 0.0
        %487 = vmatprep.subr.mxu0 0.0
        %488 = vmatpush1.msra.mxu0 0.0
        %489 = vmatprep.subr.mxu0 0.0
        %490 = vmatpush1.msra.mxu0 0.0
        %491 = vmatprep.subr.mxu0 0.0
        %492 = vmatpush1.msra.mxu0 0.0
        %493 = vmatprep.subr.mxu0 0.0
        %494 = vmatpush1.msra.mxu0 0.0
        %495 = vmatprep.subr.mxu0 0.0
        %496 = vmatpush1.msra.mxu0 0.0
        %497 = vmatprep.subr.mxu0 0.0
        %498 = vmatpush1.msra.mxu0 0.0
        %499 = vmatprep.subr.mxu0 0.0
        %500 = vmatpush1.msra.mxu0 0.0
        %501 = vmatprep.subr.mxu0 0.0
        %502 = vmatpush1.msra.mxu0 0.0
        %503 = vmatprep.subr.mxu0 0.0
        %504 = vmatpush1.msra.mxu0 0.0
        %505 = vmatprep.subr.mxu0 0.0
        %506 = vmatpush1.msra.mxu0 0.0
        %507 = vmatprep.subr.mxu0 0.0
        %508 = vmatpush1.msra.mxu0 0.0
        %509 = vmatprep.subr.mxu0 0.0
        %510 = vmatpush1.msra.mxu0 0.0
        %511 = vmatprep.subr.mxu0 0.0
        %512 = vmatpush1.msra.mxu0 0.0
        %513 = vmatprep.subr.mxu0 0.0
        %514 = vmatpush1.msra.mxu0 0.0
        %515 = vmatprep.mubr.f32.mxu0 0.0
        %516 = vmatmul.mubr.f32.gmra.mrb[0].mxu0 %v446
        %v517 = vpop.f32.mrb[0].mxu0
        %v518 = vadd.f32 0.0, %v517
        %v519 = vpop.f32.mrb[0].mxu0
        %v520 = vadd.f32 0.0, %v519
        %521 = vmatprep.mubr.f32.mxu0 0.0
        %522 = vmatmul.mubr.f32.gmra.mrb[0].mxu0 %v449
        %v523 = vpop.f32.mrb[0].mxu0
        %v524 = vadd.f32 0.0, %v523
        %v525 = vpop.f32.mrb[0].mxu0
        %v526 = vadd.f32 0.0, %v525
        %527 = vdwg.mxu0
        %v528 = vadd.f32 %v416, %v518
        %v529 = vadd.f32 %v418, %v520
        %v530 = vadd.f32 %v422, %v524
        %v531 = vadd.f32 %v424, %v526
        %v532 = vld [vmem:[#allocation2 + $0x3] sm:$0xff]
        %v533 = vld [vmem:[#allocation2 + $0xb] sm:$0xff]
        %s534 = scalar_lea.vmem [#allocation6], 384
        %v535 = vld [vmem:[%s534] sm:$0xff]
        %v536 = vld [vmem:[%s534 + $0x8] sm:$0xff]
        %v537 = vld [vmem:[%s534 + $0x10] sm:$0xff]
        %v538 = vld [vmem:[%s534 + $0x18] sm:$0xff]
        %v539 = vld [vmem:[%s534 + $0x20] sm:$0xff]
        %v540 = vld [vmem:[%s534 + $0x28] sm:$0xff]
        %v541 = vld [vmem:[%s534 + $0x30] sm:$0xff]
        %v542 = vld [vmem:[%s534 + $0x38] sm:$0xff]
        %v543 = vld [vmem:[%s534 + $0x40] sm:$0xff]
        %v544 = vld [vmem:[%s534 + $0x48] sm:$0xff]
        %v545 = vld [vmem:[%s534 + $0x50] sm:$0xff]
        %v546 = vld [vmem:[%s534 + $0x58] sm:$0xff]
        %v547 = vld [vmem:[%s534 + $0x60] sm:$0xff]
        %v548 = vld [vmem:[%s534 + $0x68] sm:$0xff]
        %v549 = vld [vmem:[%s534 + $0x70] sm:$0xff]
        %v550 = vld [vmem:[%s534 + $0x78] sm:$0xff]
        %v552 = vsel %vm201, %v532, 0
        %v555 = vsel %vm201, %v533, 0
        %557 = vmatprep.subr.mxu0 %v536
        %558 = vmatpush1.msra.mxu0 %v535
        %559 = vmatprep.subr.mxu0 %v538
        %560 = vmatpush1.msra.mxu0 %v537
        %561 = vmatprep.subr.mxu0 %v540
        %562 = vmatpush1.msra.mxu0 %v539
        %563 = vmatprep.subr.mxu0 %v542
        %564 = vmatpush1.msra.mxu0 %v541
        %565 = vmatprep.subr.mxu0 %v544
        %566 = vmatpush1.msra.mxu0 %v543
        %567 = vmatprep.subr.mxu0 %v546
        %568 = vmatpush1.msra.mxu0 %v545
        %569 = vmatprep.subr.mxu0 %v548
        %570 = vmatpush1.msra.mxu0 %v547
        %571 = vmatprep.subr.mxu0 %v550
        %572 = vmatpush1.msra.mxu0 %v549
        %573 = vmatprep.subr.mxu0 0.0
        %574 = vmatpush1.msra.mxu0 0.0
        %575 = vmatprep.subr.mxu0 0.0
        %576 = vmatpush1.msra.mxu0 0.0
        %577 = vmatprep.subr.mxu0 0.0
        %578 = vmatpush1.msra.mxu0 0.0
        %579 = vmatprep.subr.mxu0 0.0
        %580 = vmatpush1.msra.mxu0 0.0
        %581 = vmatprep.subr.mxu0 0.0
        %582 = vmatpush1.msra.mxu0 0.0
        %583 = vmatprep.subr.mxu0 0.0
        %584 = vmatpush1.msra.mxu0 0.0
        %585 = vmatprep.subr.mxu0 0.0
        %586 = vmatpush1.msra.mxu0 0.0
        %587 = vmatprep.subr.mxu0 0.0
        %588 = vmatpush1.msra.mxu0 0.0
        %589 = vmatprep.subr.mxu0 0.0
        %590 = vmatpush1.msra.mxu0 0.0
        %591 = vmatprep.subr.mxu0 0.0
        %592 = vmatpush1.msra.mxu0 0.0
        %593 = vmatprep.subr.mxu0 0.0
        %594 = vmatpush1.msra.mxu0 0.0
        %595 = vmatprep.subr.mxu0 0.0
        %596 = vmatpush1.msra.mxu0 0.0
        %597 = vmatprep.subr.mxu0 0.0
        %598 = vmatpush1.msra.mxu0 0.0
        %599 = vmatprep.subr.mxu0 0.0
        %600 = vmatpush1.msra.mxu0 0.0
        %601 = vmatprep.subr.mxu0 0.0
        %602 = vmatpush1.msra.mxu0 0.0
        %603 = vmatprep.subr.mxu0 0.0
        %604 = vmatpush1.msra.mxu0 0.0
        %605 = vmatprep.subr.mxu0 0.0
        %606 = vmatpush1.msra.mxu0 0.0
        %607 = vmatprep.subr.mxu0 0.0
        %608 = vmatpush1.msra.mxu0 0.0
        %609 = vmatprep.subr.mxu0 0.0
        %610 = vmatpush1.msra.mxu0 0.0
        %611 = vmatprep.subr.mxu0 0.0
        %612 = vmatpush1.msra.mxu0 0.0
        %613 = vmatprep.subr.mxu0 0.0
        %614 = vmatpush1.msra.mxu0 0.0
        %615 = vmatprep.subr.mxu0 0.0
        %616 = vmatpush1.msra.mxu0 0.0
        %617 = vmatprep.subr.mxu0 0.0
        %618 = vmatpush1.msra.mxu0 0.0
        %619 = vmatprep.subr.mxu0 0.0
        %620 = vmatpush1.msra.mxu0 0.0
        %621 = vmatprep.mubr.f32.mxu0 0.0
        %622 = vmatmul.mubr.f32.gmra.mrb[0].mxu0 %v552
        %v623 = vpop.f32.mrb[0].mxu0
        %v624 = vadd.f32 0.0, %v623
        %v625 = vpop.f32.mrb[0].mxu0
        %v626 = vadd.f32 0.0, %v625
        %627 = vmatprep.mubr.f32.mxu0 0.0
        %628 = vmatmul.mubr.f32.gmra.mrb[0].mxu0 %v555
        %v629 = vpop.f32.mrb[0].mxu0
        %v630 = vadd.f32 0.0, %v629
        %v631 = vpop.f32.mrb[0].mxu0
        %v632 = vadd.f32 0.0, %v631
        %633 = vdwg.mxu0
        %v634 = vadd.f32 %v528, %v624
        %v635 = vadd.f32 %v529, %v626
        %v636 = vadd.f32 %v530, %v630
        %v637 = vadd.f32 %v531, %v632
        %v638 = vld [vmem:[%s2] sm:$0x3]
        %v640 = vlaneseq
        %v641 = vshrl.u32 %v640, 7
        %v642 = vsub.s32 0, %v641
        %v643 = vrot.slane %v638, %v642
        %v644 = vlaneseq
        %v645 = vshrl.u32 %v644, 7
        %v646 = vsub.s32 1, %v645
        %v647 = vrot.slane %v638, %v646
        %v650 = vadd.f32 %v634, %v643
        %v651 = vadd.f32 %v635, %v647
        %v652 = vadd.f32 %v636, %v643
        %v653 = vadd.f32 %v637, %v647
        %vm654 = vcmp.ge.f32.partialorder %v650, 0.0
        %vm655 = vcmp.ge.f32.partialorder %v651, 0.0
        %vm656 = vcmp.ge.f32.partialorder %v652, 0.0
        %vm657 = vcmp.ge.f32.partialorder %v653, 0.0
        %v658 = vmul.f32 %v650, 0.2
        %v659 = vmul.f32 %v651, 0.2
        %v660 = vmul.f32 %v652, 0.2
        %v661 = vmul.f32 %v653, 0.2
        %v662 = vsel %vm654, %v650, %v658
        %v663 = vsel %vm655, %v651, %v659
        %v664 = vsel %vm656, %v652, %v660
        %v665 = vsel %vm657, %v653, %v661
        %666 = vst [vmem:[%s200] sm:$0xff] %v662
        %vm667 = vcmask 130048
        %668 = vst.msk [vmem:[%s200 + $0x8] sm:$0xff] %vm667, %v663
        %669 = vst [vmem:[%s200 + $0x10] sm:$0xff] %v664
        %670 = vst.msk [vmem:[%s200 + $0x18] sm:$0xff] %vm667, %v665
        %s671 = sand.u32 %s97, 1
        %s672 = scalar_lea.sflag [#allocation5], %s671
        %s673 = sand.u32 %s97, 1
        %s674 = smul.addr %s673, 32
        %s675 = scalar_lea.vmem [#allocation8], %s674
        // Predicated region
        $region41: #{tpu_custom_call.1} parent=31 // pred_check
          %p676 = pneg %p107
        $region42: #{tpu_custom_call.1} parent=31 // pred_check_branch
          %678 = sbr.rel (%p676) target = $region44
        $region43: #{tpu_custom_call.1} parent=31 // pred_region
          %s680 = ssub.s32 512, 512
          %681 = vsyncadd %s672, %s680
          %s682 = smul.addr %s21, 4
          %s683 = smul.addr %s682, 128
          %s684 = scalar_lea.hbm %s3, %s683
          %s685 = sshll.u32 %s675, 4
          %s686 = int_to_ptr.vmem [resolvable:$true] %s685
          %691 = dma.vmem_to_hbm [thread:$0]  %s686, 512, %s684, %s672, 256, 256, 16
        $region44: #{tpu_custom_call.1} parent=31 // pred_fallthru
          _
      $region32: #{tpu_custom_call.1} parent=5 // pred_fallthru
        _
      %p692 = scmp.le.s32.totalorder 2, %s16
      // Predicated region
      $region45: #{tpu_custom_call.1} parent=5 // pred_check
        %p693 = pneg %p692
      $region46: #{tpu_custom_call.1} parent=5 // pred_check_branch
        %695 = sbr.rel (%p693) target = $region48
      $region47: #{tpu_custom_call.1} parent=5 // pred_region
        %s696 = ssub.s32 %s16, 2
        // Predicated region
        $region49: #{tpu_custom_call.1} parent=47 // pred_check
          %p697 = pneg %p113
        $region50: #{tpu_custom_call.1} parent=47 // pred_check_branch
          %699 = sbr.rel (%p697) target = $region52
        $region51: #{tpu_custom_call.1} parent=47 // pred_region
          %s700 = sand.u32 %s98, 1
          %s701 = scalar_lea.sflag [#allocation5], %s700
          %s702 = sand.u32 %s98, 1
          %s703 = smul.addr %s702, 32
          %s704 = scalar_lea.vmem [#allocation8], %s703
          %705 = dma.done %s701, 512
        $region52: #{tpu_custom_call.1} parent=47 // pred_fallthru
          _
      $region48: #{tpu_custom_call.1} parent=5 // pred_fallthru
        _
    $region6: #{tpu_custom_call.1} parent=1 // loop_footer
      %s20 = sadd.s32 1, %s16
    $region7: #{tpu_custom_call.1} parent=1 // loop_footer_branch
      %15 = sbr.rel target = $region3
    $region8: #{tpu_custom_call.1} parent=1 // loop_exit
      _
    %706 = vsyncpa [#allocation4], 1
    %s707 = scalar_lea.sflag [#allocation4], 1
    %708 = vsyncpa %s707, 1
    %709 = vsyncpa [#allocation7], 1
    %710 = vsyncpa [#allocation5], 1
    %s711 = scalar_lea.sflag [#allocation5], 1
    %712 = vsyncpa %s711, 1

</llo_original>
